<compile_context>
chip_gen: v5e
topology: v5e:2x2
jax: 0.10.0
libtpu: 0.0.40
codegen_flags: <defaults>
</compile_context>

<pallas_src>
import jax
import jax.numpy as jnp
import numpy as np
from jax.experimental import pallas as pl
from jax.experimental.pallas import tpu as pltpu


# ----------------------------- Pallas kernel ---------------------------------
def critic_kernel(x_ref, w1_ref, b1_ref, w2_ref, b2_ref, w3_ref, b3_ref, o_ref):
    cdt = x_ref.dtype  # compute dtype (f32 or bf16); accumulation is always f32

    # Layer 1: [bm, D] @ [D, H] + [1, H] -> tanh
    h1 = jnp.tanh(
        jnp.dot(x_ref[...], w1_ref[...], preferred_element_type=jnp.float32)
        + b1_ref[...]
    ).astype(cdt)

    # Layer 2: [bm, H] @ [H, H] + [1, H] -> tanh
    h2 = jnp.tanh(
        jnp.dot(h1, w2_ref[...], preferred_element_type=jnp.float32)
        + b2_ref[...]
    ).astype(cdt)

    # Output head: (1, H) contracted against (bm, H) on H -> (1, bm).
    # Result lands lane-major, so the final store is a dense full-lane vst
    # instead of bm masked 1-lane stores.
    head = jax.lax.dot_general(
        w3_ref[...], h2,
        dimension_numbers=(((1,), (1,)), ((), ())),
        preferred_element_type=jnp.float32,
    )
    o_ref[...] = (head + b3_ref[...]).astype(o_ref.dtype)


# ------------------------------- wrapper --------------------------------------
def _round_up(n, m):
    return ((n + m - 1) // m) * m


def custom_critic_net(x, params, *, bm=None, compute_dtype=None):
    """Forward pass of CustomCriticNet via a fused Pallas kernel.

    x: [B, input_size] float32
    params: dict with w1 [D,H], b1 [1,H], w2 [H,H], b2 [1,H], w3 [1,H], b3 [1,1]
    returns: [B, 1] float32
    """
    B, D = x.shape
    H = params["w1"].shape[1]

    # Batch tile: large (MXU/sublane-filling) but capped at 512 so large
    # batches still yield >=2 parallel grid steps (feeds both v7x TCs).
    if bm is None:
        bm = min(512, _round_up(B, 8))
    bm = max(8, _round_up(bm, 8))

    # Ragged batch: pad rows up to a multiple of bm, drop them on return.
    Bp = _round_up(B, bm)
    if Bp != B:
        x = jnp.pad(x, ((0, Bp - B), (0, 0)))

    # Optional reduced-precision inputs/weights (e.g. bf16 on v6e);
    # accumulation stays f32 inside the kernel.
    cdt = compute_dtype if compute_dtype is not None else x.dtype
    x = x.astype(cdt)
    w1 = params["w1"].astype(cdt)
    w2 = params["w2"].astype(cdt)
    w3 = params["w3"].astype(cdt)
    b1, b2, b3 = params["b1"], params["b2"], params["b3"]  # keep f32

    grid = (Bp // bm,)
    full = lambda shape: pl.BlockSpec(shape, lambda i: (0,) * len(shape))

    cost = pl.CostEstimate(
        flops=2 * Bp * (D * H + H * H + H),
        transcendentals=2 * Bp * H,
        bytes_accessed=4 * (Bp * D + D * H + H * H + 3 * H + 1 + Bp),
    )

    out_row = pl.pallas_call(
        critic_kernel,
        out_shape=jax.ShapeDtypeStruct((1, Bp), jnp.float32),
        grid_spec=pltpu.PrefetchScalarGridSpec(
            num_scalar_prefetch=0,
            grid=grid,
            in_specs=[
                pl.BlockSpec((bm, D), lambda i: (i, 0)),  # x tile
                full((D, H)),                              # w1
                full((1, H)),                              # b1
                full((H, H)),                              # w2
                full((1, H)),                              # b2
                full((1, H)),                              # w3 (row)
                full((1, 1)),                              # b3
            ],
            out_specs=pl.BlockSpec((1, bm), lambda i: (0, i)),  # lane-dense row
        ),
        compiler_params=pltpu.CompilerParams(
            dimension_semantics=("parallel",)
        ),
        cost_estimate=cost,
    )(x, w1, b1, w2, b2, w3, b3)

    # (1, Bp) -> (Bp, 1), drop padding rows.
    return out_row.reshape(Bp, 1)[:B]


# --------------------------- parameter construction --------------------------
def _orthogonal(key, rows, cols):
    """Deterministic orthogonal init (torch.nn.init.orthogonal_ semantics)."""
    a = jax.random.normal(key, (max(rows, cols), min(rows, cols)), dtype=jnp.float32)
    q, r = jnp.linalg.qr(a)
    q = q * jnp.sign(jnp.diag(r))[None, :]
    if rows < cols:
        q = q.T
    return q[:rows, :cols]


def init_params(key, input_size, hidden_dim):
    k1, k2, k3 = jax.random.split(key, 3)
    # PyTorch Linear weights are (out, in); w1/w2 stored transposed as (in, out),
    # w3 stored as the (1, H) row directly.
    w1_pt = _orthogonal(k1, hidden_dim, input_size)   # (H, D)
    w2_pt = _orthogonal(k2, hidden_dim, hidden_dim)   # (H, H)
    w3_pt = _orthogonal(k3, 1, hidden_dim)            # (1, H)
    return {
        "w1": jnp.asarray(w1_pt.T, jnp.float32),      # (D, H)
        "b1": jnp.zeros((1, hidden_dim), jnp.float32),
        "w2": jnp.asarray(w2_pt.T, jnp.float32),      # (H, H)
        "b2": jnp.zeros((1, hidden_dim), jnp.float32),
        "w3": jnp.asarray(w3_pt, jnp.float32),        # (1, H)
        "b3": jnp.zeros((1, 1), jnp.float32),
    }


def reference_forward(x, p):
    h1 = jnp.tanh(x @ p["w1"] + p["b1"])
    h2 = jnp.tanh(h1 @ p["w2"] + p["b2"])
    return h2 @ p["w3"].T + p["b3"]


# ----------------------------------- main -------------------------------------
if __name__ == "__main__":
    input_size = 16
    hidden_dim = 32

    key = jax.random.PRNGKey(0)
    kp, kx1, kx2, kx3 = jax.random.split(key, 4)
    params = init_params(kp, input_size, hidden_dim)

    # 1) Tiny batch (single tile, block == full dims).
    x_small = jax.random.normal(kx1, (8, input_size), dtype=jnp.float32)
    out_small = jax.block_until_ready(custom_critic_net(x_small, params))
    np.testing.assert_allclose(np.asarray(out_small),
                               np.asarray(reference_forward(x_small, params)),
                               rtol=1e-5, atol=1e-5)
    assert out_small.shape == (8, 1)

    # 2) Ragged batch (exercises the padding path).
    x_ragged = jax.random.normal(kx2, (10, input_size), dtype=jnp.float32)
    out_ragged = jax.block_until_ready(custom_critic_net(x_ragged, params))
    np.testing.assert_allclose(np.asarray(out_ragged),
                               np.asarray(reference_forward(x_ragged, params)),
                               rtol=1e-5, atol=1e-5)
    assert out_ragged.shape == (10, 1)

    # 3) Larger batch (multi-tile grid, lane-dense 512-wide output blocks).
    x_big = jax.random.normal(kx3, (600, input_size), dtype=jnp.float32)
    out_big = jax.block_until_ready(custom_critic_net(x_big, params))
    np.testing.assert_allclose(np.asarray(out_big),
                               np.asarray(reference_forward(x_big, params)),
                               rtol=1e-5, atol=1e-5)
    assert out_big.shape == (600, 1)

    print("KERNEL_OK")
</pallas_src>

<mosaic_0001>
module attributes {stable_mosaic.version = 11 : i64} {
  func.func @critic_kernel(%arg0: i32, %arg1: memref<8x16xf32, #tpu.memory_space<vmem>>, %arg2: memref<16x32xf32, #tpu.memory_space<vmem>>, %arg3: memref<1x32xf32, #tpu.memory_space<vmem>>, %arg4: memref<32x32xf32, #tpu.memory_space<vmem>>, %arg5: memref<1x32xf32, #tpu.memory_space<vmem>>, %arg6: memref<1x32xf32, #tpu.memory_space<vmem>>, %arg7: memref<1x1xf32, #tpu.memory_space<vmem>>, %arg8: memref<1x8xf32, #tpu.memory_space<vmem>>) attributes {dimension_semantics = [#tpu.dimension_semantics<parallel>], iteration_bounds = array<i64: 1>, scalar_prefetch = 0 : i64, scratch_operands = 0 : i64, tpu.core_type = #tpu.core_type<tc>, window_params = [{transform_indices = @transform_0, window_bounds = array<i64: 8, 16>}, {pipeline_mode = #tpu.pipeline_mode<synchronous>, transform_indices = @transform_1, window_bounds = array<i64: 16, 32>}, {pipeline_mode = #tpu.pipeline_mode<synchronous>, transform_indices = @transform_2, window_bounds = array<i64: 1, 32>}, {pipeline_mode = #tpu.pipeline_mode<synchronous>, transform_indices = @transform_3, window_bounds = array<i64: 32, 32>}, {pipeline_mode = #tpu.pipeline_mode<synchronous>, transform_indices = @transform_4, window_bounds = array<i64: 1, 32>}, {pipeline_mode = #tpu.pipeline_mode<synchronous>, transform_indices = @transform_5, window_bounds = array<i64: 1, 32>}, {pipeline_mode = #tpu.pipeline_mode<synchronous>, transform_indices = @transform_6, window_bounds = array<i64: 1, 1>}, {transform_indices = @transform_7, window_bounds = array<i64: 1, 8>}]} {
    %c0 = arith.constant 0 : index
    %c0_0 = arith.constant 0 : index
    %0 = vector.load %arg1[%c0, %c0_0] : memref<8x16xf32, #tpu.memory_space<vmem>>, vector<8x16xf32>
    %c0_1 = arith.constant 0 : index
    %c0_2 = arith.constant 0 : index
    %1 = vector.load %arg2[%c0_1, %c0_2] : memref<16x32xf32, #tpu.memory_space<vmem>>, vector<16x32xf32>
    %cst = arith.constant dense<0.000000e+00> : vector<8x32xf32>
    %2 = tpu.matmul %0, %1, %cst {dimension_numbers = #tpu.dot_dimension_numbers<[1], [0], [0], [1], [0, 0, 1, 1], [], []>} : vector<8x16xf32>, vector<16x32xf32>, vector<8x32xf32> -> vector<8x32xf32>
    %c0_3 = arith.constant 0 : index
    %c0_4 = arith.constant 0 : index
    %3 = vector.load %arg3[%c0_3, %c0_4] : memref<1x32xf32, #tpu.memory_space<vmem>>, vector<1x32xf32>
    %4 = vector.broadcast %3 : vector<1x32xf32> to vector<8x32xf32>
    %5 = arith.addf %2, %4 : vector<8x32xf32>
    %6 = math.tanh %5 : vector<8x32xf32>
    %c0_5 = arith.constant 0 : index
    %c0_6 = arith.constant 0 : index
    %7 = vector.load %arg4[%c0_5, %c0_6] : memref<32x32xf32, #tpu.memory_space<vmem>>, vector<32x32xf32>
    %cst_7 = arith.constant dense<0.000000e+00> : vector<8x32xf32>
    %8 = tpu.matmul %6, %7, %cst_7 {dimension_numbers = #tpu.dot_dimension_numbers<[1], [0], [0], [1], [0, 0, 1, 1], [], []>} : vector<8x32xf32>, vector<32x32xf32>, vector<8x32xf32> -> vector<8x32xf32>
    %c0_8 = arith.constant 0 : index
    %c0_9 = arith.constant 0 : index
    %9 = vector.load %arg5[%c0_8, %c0_9] : memref<1x32xf32, #tpu.memory_space<vmem>>, vector<1x32xf32>
    %10 = vector.broadcast %9 : vector<1x32xf32> to vector<8x32xf32>
    %11 = arith.addf %8, %10 : vector<8x32xf32>
    %12 = math.tanh %11 : vector<8x32xf32>
    %c0_10 = arith.constant 0 : index
    %c0_11 = arith.constant 0 : index
    %13 = vector.load %arg6[%c0_10, %c0_11] : memref<1x32xf32, #tpu.memory_space<vmem>>, vector<1x32xf32>
    %cst_12 = arith.constant dense<0.000000e+00> : vector<1x8xf32>
    %14 = tpu.matmul %13, %12, %cst_12 {dimension_numbers = #tpu.dot_dimension_numbers<[1], [1], [0], [0], [0, 0, 1, 0], [], []>} : vector<1x32xf32>, vector<8x32xf32>, vector<1x8xf32> -> vector<1x8xf32>
    %c0_13 = arith.constant 0 : index
    %c0_14 = arith.constant 0 : index
    %15 = vector.load %arg7[%c0_13, %c0_14] : memref<1x1xf32, #tpu.memory_space<vmem>>, vector<1x1xf32>
    %16 = vector.broadcast %15 : vector<1x1xf32> to vector<1x8xf32>
    %17 = arith.addf %14, %16 : vector<1x8xf32>
    %c0_15 = arith.constant 0 : index
    %c0_16 = arith.constant 0 : index
    %18 = vector.load %arg8[%c0_15, %c0_16] : memref<1x8xf32, #tpu.memory_space<vmem>>, vector<1x8xf32>
    tpu.vector_store %arg8[%c0_15, %c0_16], %17 {strides = array<i32>} : memref<1x8xf32, #tpu.memory_space<vmem>>, vector<1x8xf32>,
    return
  }
  func.func @transform_0(%arg0: i32) -> (i32, i32) {
    %c0_i32 = arith.constant 0 : i32
    %c0_i32_0 = arith.constant 0 : i32
    return %arg0, %c0_i32 : i32, i32
  }
  func.func @transform_1(%arg0: i32) -> (i32, i32) {
    %c0_i32 = arith.constant 0 : i32
    %c0_i32_0 = arith.constant 0 : i32
    %c0_i32_1 = arith.constant 0 : i32
    return %c0_i32, %c0_i32_0 : i32, i32
  }
  func.func @transform_2(%arg0: i32) -> (i32, i32) {
    %c0_i32 = arith.constant 0 : i32
    %c0_i32_0 = arith.constant 0 : i32
    %c0_i32_1 = arith.constant 0 : i32
    return %c0_i32, %c0_i32_0 : i32, i32
  }
  func.func @transform_3(%arg0: i32) -> (i32, i32) {
    %c0_i32 = arith.constant 0 : i32
    %c0_i32_0 = arith.constant 0 : i32
    %c0_i32_1 = arith.constant 0 : i32
    return %c0_i32, %c0_i32_0 : i32, i32
  }
  func.func @transform_4(%arg0: i32) -> (i32, i32) {
    %c0_i32 = arith.constant 0 : i32
    %c0_i32_0 = arith.constant 0 : i32
    %c0_i32_1 = arith.constant 0 : i32
    return %c0_i32, %c0_i32_0 : i32, i32
  }
  func.func @transform_5(%arg0: i32) -> (i32, i32) {
    %c0_i32 = arith.constant 0 : i32
    %c0_i32_0 = arith.constant 0 : i32
    %c0_i32_1 = arith.constant 0 : i32
    return %c0_i32, %c0_i32_0 : i32, i32
  }
  func.func @transform_6(%arg0: i32) -> (i32, i32) {
    %c0_i32 = arith.constant 0 : i32
    %c0_i32_0 = arith.constant 0 : i32
    %c0_i32_1 = arith.constant 0 : i32
    return %c0_i32, %c0_i32_0 : i32, i32
  }
  func.func @transform_7(%arg0: i32) -> (i32, i32) {
    %c0_i32 = arith.constant 0 : i32
    %c0_i32_0 = arith.constant 0 : i32
    return %c0_i32, %arg0 : i32, i32
  }
}

</mosaic_0001>

<llo_original>
// kernel: tpu_custom_call.1
$region0: #{tpu_custom_call.1}
  #allocation0 [shape = 'u32[]', space=smem, size = 0x4, offset = 0x4, fixed_abs, tag = 'smem constant byte address 0x4 - core index']
  #allocation1 [shape = 'u32[72,128]{1,0:T(1,128)}', space=vmem, size = 0x9000, scoped, tag = 'internal scratch']
  #allocation2 [shape = 'f32[1,1]{1,0:T(1,128)S(1)}', space=vmem, size = 0x200, scoped, tag = 'scoped memory for tpu_custom_call.1']
  %s0 = inlined_call_operand.hbm [shape: f32[8,16], index: 0, kind: input, shape index: {}]
  %s1 = inlined_call_operand.hbm [shape: f32[16,32], index: 1, kind: input, shape index: {}]
  %s2 = inlined_call_operand.vmem [shape: f32[1,32], index: 2, kind: input, shape index: {}]
  %s3 = inlined_call_operand.hbm [shape: f32[32,32], index: 3, kind: input, shape index: {}]
  %s4 = inlined_call_operand.vmem [shape: f32[1,32], index: 4, kind: input, shape index: {}]
  %s5 = inlined_call_operand.vmem [shape: f32[1,32], index: 5, kind: input, shape index: {}]
  %s6 = inlined_call_operand.<no memory space> [shape: f32[1,1], index: 6, kind: input, shape index: {}]
  %s7 = inlined_call_operand.hbm [shape: f32[1,8], index: 7, kind: output, shape index: {}]
  %s8 = sld [smem:[#allocation0]]
  $region50: #{tpu_custom_call.1} parent=0
    _
  %s10 = ssub.s32 1, %s8
  %s11 = scalar_select 0, %s10, %s8
  %v12 = vstv %s6
  %13 = vst [vmem:[#allocation2] sm:$0x1] %v12
  $region1: #{tpu_custom_call.1} parent=0
    #allocation3 [shape = 'u8[4096]{0}', space=vmem, size = 0x1000, scoped, tag = 'input window, operand 0, single buffered']
    #allocation4 [shape = 's32[1]{0}', space=sflag, size = 0x4, scoped, tag = 'scoped memory for tpu_custom_call.1']
    #allocation5 [shape = 's32[1]{0}', space=sflag, size = 0x4, scoped, tag = 'scoped memory for tpu_custom_call.1']
    #allocation6 [shape = 'u8[8192]{0}', space=vmem, size = 0x2000, scoped, tag = 'input window, operand 1, single buffered']
    #allocation7 [shape = 's32[1]{0}', space=sflag, size = 0x4, scoped, tag = 'scoped memory for tpu_custom_call.1']
    #allocation8 [shape = 'u8[16384]{0}', space=vmem, size = 0x4000, scoped, tag = 'input window, operand 3, single buffered']
    #allocation9 [shape = 'u8[512]{0}', space=vmem, size = 0x400, scoped, tag = 'output window, operand 0, single buffered']
    %14 = vsyncpa [#allocation4], 0
    %15 = vsyncpa [#allocation7], 0
    %16 = vsyncpa [#allocation5], 0
    // Predicated region
    $region2: #{tpu_custom_call.1} parent=1 // pred_check
      _
    $region3: #{tpu_custom_call.1} parent=1 // pred_check_branch
      %18 = sbr.rel (0) target = $region5
    $region4: #{tpu_custom_call.1} parent=1 // pred_region
      %20 = vsyncadd [#allocation4], 0
      %s22 = sshll.u32 %s0, 4
      %s23 = int_to_ptr.hbm [resolvable:$true] %s22
      %s24 = sshll.u32 [#allocation3], 4
      %s25 = int_to_ptr.vmem [resolvable:$true] %s24
      %27 = dma.hbm_to_vmem [thread:$0]  %s23, 128, %s25, [#allocation4]
    $region5: #{tpu_custom_call.1} parent=1 // pred_fallthru
      _
    // Predicated region
    $region6: #{tpu_custom_call.1} parent=1 // pred_check
      _
    $region7: #{tpu_custom_call.1} parent=1 // pred_check_branch
      %29 = sbr.rel (0) target = $region9
    $region8: #{tpu_custom_call.1} parent=1 // pred_region
      %31 = vsyncadd [#allocation7], 0
      %s32 = sshll.u32 %s1, 4
      %s33 = int_to_ptr.hbm [resolvable:$true] %s32
      %s34 = sshll.u32 [#allocation6], 4
      %s35 = int_to_ptr.vmem [resolvable:$true] %s34
      %40 = dma.hbm_to_vmem [thread:$0]  %s33, 256, %s35, [#allocation7], 128, 128, 8
    $region9: #{tpu_custom_call.1} parent=1 // pred_fallthru
      _
    // Predicated region
    $region10: #{tpu_custom_call.1} parent=1 // pred_check
      _
    $region11: #{tpu_custom_call.1} parent=1 // pred_check_branch
      %42 = sbr.rel (0) target = $region13
    $region12: #{tpu_custom_call.1} parent=1 // pred_region
      _
    $region13: #{tpu_custom_call.1} parent=1 // pred_fallthru
      _
    // Predicated region
    $region14: #{tpu_custom_call.1} parent=1 // pred_check
      _
    $region15: #{tpu_custom_call.1} parent=1 // pred_check_branch
      %44 = sbr.rel (0) target = $region17
    $region16: #{tpu_custom_call.1} parent=1 // pred_region
      %46 = vsyncadd [#allocation7], 0
      %s47 = sshll.u32 %s3, 4
      %s48 = int_to_ptr.hbm [resolvable:$true] %s47
      %s49 = sshll.u32 [#allocation8], 4
      %s50 = int_to_ptr.vmem [resolvable:$true] %s49
      %55 = dma.hbm_to_vmem [thread:$0]  %s48, 512, %s50, [#allocation7], 128, 128, 8
    $region17: #{tpu_custom_call.1} parent=1 // pred_fallthru
      _
    // Predicated region
    $region18: #{tpu_custom_call.1} parent=1 // pred_check
      _
    $region19: #{tpu_custom_call.1} parent=1 // pred_check_branch
      %57 = sbr.rel (0) target = $region21
    $region20: #{tpu_custom_call.1} parent=1 // pred_region
      _
    $region21: #{tpu_custom_call.1} parent=1 // pred_fallthru
      _
    // Predicated region
    $region22: #{tpu_custom_call.1} parent=1 // pred_check
      _
    $region23: #{tpu_custom_call.1} parent=1 // pred_check_branch
      %59 = sbr.rel (0) target = $region25
    $region24: #{tpu_custom_call.1} parent=1 // pred_region
      _
    $region25: #{tpu_custom_call.1} parent=1 // pred_fallthru
      _
    // Predicated region
    $region26: #{tpu_custom_call.1} parent=1 // pred_check
      _
    $region27: #{tpu_custom_call.1} parent=1 // pred_check_branch
      %61 = sbr.rel (0) target = $region29
    $region28: #{tpu_custom_call.1} parent=1 // pred_region
      _
    $region29: #{tpu_custom_call.1} parent=1 // pred_fallthru
      _
    // Predicated region
    $region30: #{tpu_custom_call.1} parent=1 // pred_check
      _
    $region31: #{tpu_custom_call.1} parent=1 // pred_check_branch
      %63 = sbr.rel (0) target = $region33
    $region32: #{tpu_custom_call.1} parent=1 // pred_region
      %65 = dma.done [#allocation4], 128
    $region33: #{tpu_custom_call.1} parent=1 // pred_fallthru
      _
    // Predicated region
    $region34: #{tpu_custom_call.1} parent=1 // pred_check
      _
    $region35: #{tpu_custom_call.1} parent=1 // pred_check_branch
      %67 = sbr.rel (0) target = $region37
    $region36: #{tpu_custom_call.1} parent=1 // pred_region
      %69 = dma.done [#allocation7], 256
    $region37: #{tpu_custom_call.1} parent=1 // pred_fallthru
      _
    // Predicated region
    $region38: #{tpu_custom_call.1} parent=1 // pred_check
      _
    $region39: #{tpu_custom_call.1} parent=1 // pred_check_branch
      %71 = sbr.rel (0) target = $region41
    $region40: #{tpu_custom_call.1} parent=1 // pred_region
      %73 = dma.done [#allocation7], 512
    $region41: #{tpu_custom_call.1} parent=1 // pred_fallthru
      _
    %v74 = vld [vmem:[#allocation3] sm:$0xff]
    %v75 = vld [vmem:[#allocation6] sm:$0xff]
    %v76 = vld [vmem:[#allocation6 + $0x8] sm:$0xff]
    %v77 = vld [vmem:[%s2] sm:$0x1]
    %v79 = vperm.slane %v77, 0
    %vm81 = vcmask 130048
    %v83 = vsel %vm81, %v74, 0
    %85 = vmatpush.msra.mxu0 0.0
    %86 = vmatpush.msra.mxu0 0.0
    %87 = vmatpush.msra.mxu0 0.0
    %88 = vmatpush.msra.mxu0 0.0
    %89 = vmatpush.msra.mxu0 0.0
    %90 = vmatpush.msra.mxu0 0.0
    %91 = vmatpush.msra.mxu0 0.0
    %92 = vmatpush.msra.mxu0 0.0
    %93 = vmatpush.msra.mxu0 0.0
    %94 = vmatpush.msra.mxu0 0.0
    %95 = vmatpush.msra.mxu0 0.0
    %96 = vmatpush.msra.mxu0 0.0
    %97 = vmatpush.msra.mxu0 0.0
    %98 = vmatpush.msra.mxu0 0.0
    %99 = vmatpush.msra.mxu0 %v76
    %100 = vmatpush.msra.mxu0 %v75
    %101 = vmatmul.f32.gmra.mxu0 %v83
    %v102 = vpop.f32.mrf.mxu0
    %v103 = vadd.f32 %v79, %v102
    %104 = vdwg.mxu0
    %v105 = vtanh.pop %v103
    %v106 = vld [vmem:[#allocation8] sm:$0xff]
    %v107 = vld [vmem:[#allocation8 + $0x8] sm:$0xff]
    %v108 = vld [vmem:[#allocation8 + $0x10] sm:$0xff]
    %v109 = vld [vmem:[#allocation8 + $0x18] sm:$0xff]
    %v110 = vld [vmem:[%s4] sm:$0x1]
    %v112 = vperm.slane %v110, 0
    %vm114 = vcmask 261120
    %v116 = vsel %vm114, %v105, 0
    %118 = vmatpush.msra.mxu0 0.0
    %119 = vmatpush.msra.mxu0 0.0
    %120 = vmatpush.msra.mxu0 0.0
    %121 = vmatpush.msra.mxu0 0.0
    %122 = vmatpush.msra.mxu0 0.0
    %123 = vmatpush.msra.mxu0 0.0
    %124 = vmatpush.msra.mxu0 0.0
    %125 = vmatpush.msra.mxu0 0.0
    %126 = vmatpush.msra.mxu0 0.0
    %127 = vmatpush.msra.mxu0 0.0
    %128 = vmatpush.msra.mxu0 0.0
    %129 = vmatpush.msra.mxu0 0.0
    %130 = vmatpush.msra.mxu0 %v109
    %131 = vmatpush.msra.mxu0 %v108
    %132 = vmatpush.msra.mxu0 %v107
    %133 = vmatpush.msra.mxu0 %v106
    %134 = vmatmul.f32.gmra.mxu0 %v116
    %v135 = vpop.f32.mrf.mxu0
    %v136 = vadd.f32 %v112, %v135
    %137 = vdwg.mxu0
    %v138 = vtanh.pop %v136
    %v139 = vld [vmem:[%s5] sm:$0x1]
    %v140 = vld [vmem:[#allocation2] sm:$0x1]
    %142 = vset.pattern.permute.xlu0 0
    %143 = vperm.xlu0 %142, %v140
    %v144 = vpop.permute.xlu0 %143
    %v146 = vperm.slane %v144, 0
    %v148 = vsel %vm114, %v139, 0
    %v151 = vsel %vm114, %v138, 0
    %153 = vmatpush.xpose.msra.mxu0 0.0
    %154 = vmatpush.xpose.msra.mxu0 0.0
    %155 = vmatpush.xpose.msra.mxu0 0.0
    %156 = vmatpush.xpose.msra.mxu0 0.0
    %157 = vmatpush.xpose.msra.mxu0 0.0
    %158 = vmatpush.xpose.msra.mxu0 0.0
    %159 = vmatpush.xpose.msra.mxu0 0.0
    %160 = vmatpush.xpose.msra.mxu0 0.0
    %161 = vmatpush.xpose.msra.mxu0 0.0
    %162 = vmatpush.xpose.msra.mxu0 0.0
    %163 = vmatpush.xpose.msra.mxu0 0.0
    %164 = vmatpush.xpose.msra.mxu0 0.0
    %165 = vmatpush.xpose.msra.mxu0 0.0
    %166 = vmatpush.xpose.msra.mxu0 0.0
    %167 = vmatpush.xpose.msra.mxu0 0.0
    %168 = vmatpush.xpose.msra.mxu0 %v151
    %169 = vmatmul.f32.gmra.mxu0 %v148
    %v170 = vpop.f32.mrf.mxu0
    %v171 = vadd.f32 %v146, %v170
    %172 = vdwg.mxu0
    %vm173 = vcmask 57344
    %174 = vst.msk [vmem:[#allocation9] sm:$0x1] %vm173, %v171
    // Predicated region
    $region42: #{tpu_custom_call.1} parent=1 // pred_check
      _
    $region43: #{tpu_custom_call.1} parent=1 // pred_check_branch
      %176 = sbr.rel (0) target = $region45
    $region44: #{tpu_custom_call.1} parent=1 // pred_region
      %178 = vsyncadd [#allocation5], 0
      %s180 = sshll.u32 [#allocation9], 4
      %s181 = int_to_ptr.vmem [resolvable:$true] %s180
      %s182 = sshll.u32 %s7, 4
      %s183 = int_to_ptr.hbm [resolvable:$true] %s182
      %185 = dma.vmem_to_hbm [thread:$0]  %s181, 16, %s183, [#allocation5]
    $region45: #{tpu_custom_call.1} parent=1 // pred_fallthru
      _
    // Predicated region
    $region46: #{tpu_custom_call.1} parent=1 // pred_check
      _
    $region47: #{tpu_custom_call.1} parent=1 // pred_check_branch
      %187 = sbr.rel (0) target = $region49
    $region48: #{tpu_custom_call.1} parent=1 // pred_region
      %189 = dma.done [#allocation5], 16
    $region49: #{tpu_custom_call.1} parent=1 // pred_fallthru
      _
    %190 = vsyncpa [#allocation4], 1
    %191 = vsyncpa [#allocation7], 1
    %192 = vsyncpa [#allocation5], 1

</llo_original>
